<compile_context>
chip_gen: v5e
topology: v5e:2x2
jax: 0.10.0
libtpu: 0.0.40
codegen_flags: <defaults>
</compile_context>

<pallas_src>
import functools

import jax
import jax.numpy as jnp
from jax.experimental import pallas as pl
from jax.experimental.pallas import tpu as pltpu


# ----------------------------- helpers --------------------------------------

def _round_up(n: int, m: int) -> int:
    return ((n + m - 1) // m) * m


def _pad_feature_dim(d: int) -> int:
    # 256-multiples feed the v6e/v7x 256x256 MXU fully; tiny dims stay at 128.
    return _round_up(d, 256) if d >= 192 else _round_up(d, 128)


# ----------------------------- Pallas kernel --------------------------------

def _ae_fused_kernel(*refs, n_layers: int, sigmoid_flags: tuple,
                     out_pdims: tuple):
    # refs layout: x_ref, w_ref * n_layers, b_all_ref, o_ref
    x_ref = refs[0]
    b_ref = refs[1 + n_layers]
    o_ref = refs[-1]

    h = x_ref[...].astype(jnp.float32)
    for li in range(n_layers):
        w_ref = refs[1 + li]
        pdo = out_pdims[li]
        # bf16 MXU operands, f32 accumulation.
        h = jnp.dot(h.astype(jnp.bfloat16), w_ref[...],
                    preferred_element_type=jnp.float32)
        h = h + b_ref[li:li + 1, :pdo]          # (1, pdo) row broadcast, f32
        if sigmoid_flags[li]:
            # EUP-friendly sigmoid: 0.5*(tanh(0.5*h)+1), all f32.
            h = 0.5 * (jnp.tanh(0.5 * h) + 1.0)
    o_ref[...] = h.astype(o_ref.dtype)


# ------------------------- one-time param preparation ------------------------

def prepare_ae_params(params):
    """Pad + cast weights once (cache the result; reuse across forward calls)."""
    layer_params = list(params["encoder"]) + list(params["decoder"])
    n_enc, n_dec = len(params["encoder"]), len(params["decoder"])
    n_layers = n_enc + n_dec
    sigmoid_flags = tuple(
        [li < n_enc - 1 for li in range(n_enc)]
        + [li < n_dec - 1 for li in range(n_dec)]
    )

    dims = [layer_params[0][0].shape[0]] + [w.shape[1] for (w, _) in layer_params]
    pdims = [_pad_feature_dim(d) for d in dims]

    weights = []
    for li, (w, _) in enumerate(layer_params):
        di, do = w.shape
        wp = jnp.zeros((pdims[li], pdims[li + 1]), jnp.bfloat16)
        wp = wp.at[:di, :do].set(w.astype(jnp.bfloat16))
        weights.append(wp)

    max_pdo = max(pdims[1:])
    b_all = jnp.zeros((n_layers, max_pdo), jnp.float32)
    for li, (_, b) in enumerate(layer_params):
        b_all = b_all.at[li, :b.shape[0]].set(b.astype(jnp.float32))

    return {
        "weights": tuple(weights),
        "biases": b_all,
        "dims": tuple(dims),
        "pdims": tuple(pdims),
        "sigmoid_flags": sigmoid_flags,
        "n_layers": n_layers,
    }


# ------------------------------- forward --------------------------------------

def ae_forward(prepared, x, *, batch_tile: int = 256):
    """Fused AE forward: one pallas_call for the whole encoder+decoder chain."""
    dims, pdims = prepared["dims"], prepared["pdims"]
    n_layers = prepared["n_layers"]
    sigmoid_flags = prepared["sigmoid_flags"]
    weights = prepared["weights"]
    b_all = prepared["biases"]

    B, din = x.shape
    assert din == dims[0], "input feature dim mismatch"

    # Batch tiling: >=2 grid steps whenever the padded batch has >1 sublane
    # group (so v7x megacore can split the grid); cap tile at `batch_tile`.
    Bp0 = _round_up(B, 8)
    groups = Bp0 // 8
    bm = min(_round_up(batch_tile, 8), 8 * max(1, (groups + 1) // 2))
    Bp = _round_up(Bp0, bm)

    # Only the activation input is padded per call (data changes every call).
    x_p = jnp.pad(x.astype(jnp.float32), ((0, Bp - B), (0, pdims[0] - din)))

    in_specs = [pl.BlockSpec((bm, pdims[0]), lambda i: (i, 0))]
    # Grid-invariant weights + packed biases: whole array, single-buffered VMEM.
    in_specs += [pl.BlockSpec(memory_space=pltpu.MemorySpace.VMEM)] * n_layers
    in_specs += [pl.BlockSpec(memory_space=pltpu.MemorySpace.VMEM)]
    out_spec = pl.BlockSpec((bm, pdims[-1]), lambda i: (i, 0))

    # Explicit VMEM budget: single-buffered weights + biases + double-buffered
    # activation in/out tiles + intermediate headroom, clamped to 64 MiB.
    weight_bytes = sum(int(w.size) * 2 for w in weights)
    bias_bytes = int(b_all.size) * 4
    act_bytes = 2 * bm * (pdims[0] + pdims[-1]) * 4
    interm_bytes = 4 * bm * max(pdims) * 4
    vmem_limit = min(64 << 20,
                     max(8 << 20,
                         int(1.5 * (weight_bytes + bias_bytes + act_bytes
                                    + interm_bytes))))

    # Advisory cost estimate for XLA scheduling around the custom call.
    flops = sum(2 * Bp * pdims[i] * pdims[i + 1] for i in range(n_layers))
    transcendentals = sum(Bp * pdims[i + 1]
                          for i in range(n_layers) if sigmoid_flags[i])
    bytes_accessed = (Bp * pdims[0] * 4 + weight_bytes + bias_bytes
                      + Bp * pdims[-1] * 4)

    out_p = pl.pallas_call(
        functools.partial(_ae_fused_kernel,
                          n_layers=n_layers,
                          sigmoid_flags=sigmoid_flags,
                          out_pdims=tuple(pdims[1:])),
        out_shape=jax.ShapeDtypeStruct((Bp, pdims[-1]), jnp.float32),
        grid=(Bp // bm,),
        in_specs=in_specs,
        out_specs=out_spec,
        compiler_params=pltpu.CompilerParams(
            dimension_semantics=("parallel",),
            vmem_limit_bytes=vmem_limit),
        cost_estimate=pl.CostEstimate(
            flops=flops,
            transcendentals=transcendentals,
            bytes_accessed=bytes_accessed),
    )(x_p, *weights, b_all)

    # Slice away batch / lane padding.
    return out_p[:B, :dims[-1]]


# ------------------------------ AE params / reference ------------------------

def init_ae_params(layers, key):
    """Deterministic init matching nn.Linear shapes.

    PyTorch Linear(in, out) has weight (out, in); we store W as (in, out) so
    the kernel computes x @ W (identical math to x @ weight.T).
    """
    params = {"encoder": [], "decoder": []}

    def make_linear(key, fan_in, fan_out):
        kw, kb = jax.random.split(key)
        bound = 1.0 / jnp.sqrt(jnp.float32(fan_in))
        w = jax.random.uniform(kw, (fan_in, fan_out), jnp.float32, -bound, bound)
        b = jax.random.uniform(kb, (fan_out,), jnp.float32, -bound, bound)
        return w, b

    n = len(layers)
    keys = jax.random.split(key, 2 * (n - 1))
    k_idx = 0
    # encoder: layers[i] -> layers[i+1], i = 0 .. n-2
    for i in range(n - 1):
        params["encoder"].append(make_linear(keys[k_idx], layers[i], layers[i + 1]))
        k_idx += 1
    # decoder: layers[i] -> layers[i-1], i = n-1 .. 1
    for i in range(n - 1, 0, -1):
        params["decoder"].append(make_linear(keys[k_idx], layers[i], layers[i - 1]))
        k_idx += 1
    return params


def ae_forward_ref(params, x):
    """Pure-JAX f32 reference for correctness checking."""
    h = x
    enc = params["encoder"]
    for li, (w, b) in enumerate(enc):
        h = h @ w + b
        if li < len(enc) - 1:
            h = jax.nn.sigmoid(h)
    dec = params["decoder"]
    for li, (w, b) in enumerate(dec):
        h = h @ w + b
        if li < len(dec) - 1:
            h = jax.nn.sigmoid(h)
    return h


# --------------------------------- main --------------------------------------

if __name__ == "__main__":
    # Small layer sizes consistent with the AE module's (decreasing) layer tuple.
    layers = (32, 16, 8, 4)
    batch = 2

    key = jax.random.PRNGKey(0)
    k_params, k_x = jax.random.split(key)

    params = init_ae_params(layers, k_params)
    prepared = prepare_ae_params(params)          # one-time padding / bf16 cast
    x = jax.random.normal(k_x, (batch, layers[0]), jnp.float32)

    out = ae_forward(prepared, x)
    out = jax.block_until_ready(out)

    # sanity check against pure-JAX f32 reference (bf16 matmul operands ->
    # loosened tolerance per review).
    ref = jax.block_until_ready(ae_forward_ref(params, x))
    assert out.shape == (batch, layers[0])
    assert jnp.allclose(out, ref, atol=3e-2, rtol=3e-2), "Pallas output mismatch"

    print("KERNEL_OK")
</pallas_src>

<mosaic_0001>
module attributes {stable_mosaic.version = 11 : i64} {
  func.func @_ae_fused_kernel(%arg0: i32, %arg1: memref<8x128xf32, #tpu.memory_space<vmem>>, %arg2: memref<128x128xbf16, #tpu.memory_space<vmem>>, %arg3: memref<128x128xbf16, #tpu.memory_space<vmem>>, %arg4: memref<128x128xbf16, #tpu.memory_space<vmem>>, %arg5: memref<128x128xbf16, #tpu.memory_space<vmem>>, %arg6: memref<128x128xbf16, #tpu.memory_space<vmem>>, %arg7: memref<128x128xbf16, #tpu.memory_space<vmem>>, %arg8: memref<6x128xf32, #tpu.memory_space<vmem>>, %arg9: memref<8x128xf32, #tpu.memory_space<vmem>>) attributes {dimension_semantics = [#tpu.dimension_semantics<parallel>], iteration_bounds = array<i64: 1>, scalar_prefetch = 0 : i64, scratch_operands = 0 : i64, tpu.core_type = #tpu.core_type<tc>, window_params = [{transform_indices = @transform_0, window_bounds = array<i64: 8, 128>}, {pipeline_mode = #tpu.pipeline_mode<synchronous>, transform_indices = @transform_1, window_bounds = array<i64: 128, 128>}, {pipeline_mode = #tpu.pipeline_mode<synchronous>, transform_indices = @transform_2, window_bounds = array<i64: 128, 128>}, {pipeline_mode = #tpu.pipeline_mode<synchronous>, transform_indices = @transform_3, window_bounds = array<i64: 128, 128>}, {pipeline_mode = #tpu.pipeline_mode<synchronous>, transform_indices = @transform_4, window_bounds = array<i64: 128, 128>}, {pipeline_mode = #tpu.pipeline_mode<synchronous>, transform_indices = @transform_5, window_bounds = array<i64: 128, 128>}, {pipeline_mode = #tpu.pipeline_mode<synchronous>, transform_indices = @transform_6, window_bounds = array<i64: 128, 128>}, {pipeline_mode = #tpu.pipeline_mode<synchronous>, transform_indices = @transform_7, window_bounds = array<i64: 6, 128>}, {transform_indices = @transform_8, window_bounds = array<i64: 8, 128>}]} {
    %c0 = arith.constant 0 : index
    %c0_0 = arith.constant 0 : index
    %0 = vector.load %arg1[%c0, %c0_0] : memref<8x128xf32, #tpu.memory_space<vmem>>, vector<8x128xf32>
    %1 = arith.truncf %0 : vector<8x128xf32> to vector<8x128xbf16>
    %c0_1 = arith.constant 0 : index
    %c0_2 = arith.constant 0 : index
    %2 = vector.load %arg2[%c0_1, %c0_2] : memref<128x128xbf16, #tpu.memory_space<vmem>>, vector<128x128xbf16>
    %cst = arith.constant dense<0.000000e+00> : vector<8x128xf32>
    %3 = tpu.matmul %1, %2, %cst {dimension_numbers = #tpu.dot_dimension_numbers<[1], [0], [0], [1], [0, 0, 1, 1], [], []>} : vector<8x128xbf16>, vector<128x128xbf16>, vector<8x128xf32> -> vector<8x128xf32>
    %c0_3 = arith.constant 0 : index
    %c0_4 = arith.constant 0 : index
    %4 = vector.load %arg8[%c0_3, %c0_4] : memref<6x128xf32, #tpu.memory_space<vmem>>, vector<1x128xf32>
    %5 = vector.broadcast %4 : vector<1x128xf32> to vector<8x128xf32>
    %6 = arith.addf %3, %5 : vector<8x128xf32>
    %cst_5 = arith.constant 5.000000e-01 : f32
    %7 = vector.broadcast %cst_5 : f32 to vector<8x128xf32>
    %8 = arith.mulf %7, %6 : vector<8x128xf32>
    %9 = math.tanh %8 : vector<8x128xf32>
    %cst_6 = arith.constant 1.000000e+00 : f32
    %10 = vector.broadcast %cst_6 : f32 to vector<8x128xf32>
    %11 = arith.addf %9, %10 : vector<8x128xf32>
    %cst_7 = arith.constant 5.000000e-01 : f32
    %12 = vector.broadcast %cst_7 : f32 to vector<8x128xf32>
    %13 = arith.mulf %12, %11 : vector<8x128xf32>
    %14 = arith.truncf %13 : vector<8x128xf32> to vector<8x128xbf16>
    %c0_8 = arith.constant 0 : index
    %c0_9 = arith.constant 0 : index
    %15 = vector.load %arg3[%c0_8, %c0_9] : memref<128x128xbf16, #tpu.memory_space<vmem>>, vector<128x128xbf16>
    %cst_10 = arith.constant dense<0.000000e+00> : vector<8x128xf32>
    %16 = tpu.matmul %14, %15, %cst_10 {dimension_numbers = #tpu.dot_dimension_numbers<[1], [0], [0], [1], [0, 0, 1, 1], [], []>} : vector<8x128xbf16>, vector<128x128xbf16>, vector<8x128xf32> -> vector<8x128xf32>
    %c1 = arith.constant 1 : index
    %c0_11 = arith.constant 0 : index
    %17 = vector.load %arg8[%c1, %c0_11] : memref<6x128xf32, #tpu.memory_space<vmem>>, vector<1x128xf32>
    %18 = vector.broadcast %17 : vector<1x128xf32> to vector<8x128xf32>
    %19 = arith.addf %16, %18 : vector<8x128xf32>
    %cst_12 = arith.constant 5.000000e-01 : f32
    %20 = vector.broadcast %cst_12 : f32 to vector<8x128xf32>
    %21 = arith.mulf %20, %19 : vector<8x128xf32>
    %22 = math.tanh %21 : vector<8x128xf32>
    %cst_13 = arith.constant 1.000000e+00 : f32
    %23 = vector.broadcast %cst_13 : f32 to vector<8x128xf32>
    %24 = arith.addf %22, %23 : vector<8x128xf32>
    %cst_14 = arith.constant 5.000000e-01 : f32
    %25 = vector.broadcast %cst_14 : f32 to vector<8x128xf32>
    %26 = arith.mulf %25, %24 : vector<8x128xf32>
    %27 = arith.truncf %26 : vector<8x128xf32> to vector<8x128xbf16>
    %c0_15 = arith.constant 0 : index
    %c0_16 = arith.constant 0 : index
    %28 = vector.load %arg4[%c0_15, %c0_16] : memref<128x128xbf16, #tpu.memory_space<vmem>>, vector<128x128xbf16>
    %cst_17 = arith.constant dense<0.000000e+00> : vector<8x128xf32>
    %29 = tpu.matmul %27, %28, %cst_17 {dimension_numbers = #tpu.dot_dimension_numbers<[1], [0], [0], [1], [0, 0, 1, 1], [], []>} : vector<8x128xbf16>, vector<128x128xbf16>, vector<8x128xf32> -> vector<8x128xf32>
    %c2 = arith.constant 2 : index
    %c0_18 = arith.constant 0 : index
    %30 = vector.load %arg8[%c2, %c0_18] : memref<6x128xf32, #tpu.memory_space<vmem>>, vector<1x128xf32>
    %31 = vector.broadcast %30 : vector<1x128xf32> to vector<8x128xf32>
    %32 = arith.addf %29, %31 : vector<8x128xf32>
    %33 = arith.truncf %32 : vector<8x128xf32> to vector<8x128xbf16>
    %c0_19 = arith.constant 0 : index
    %c0_20 = arith.constant 0 : index
    %34 = vector.load %arg5[%c0_19, %c0_20] : memref<128x128xbf16, #tpu.memory_space<vmem>>, vector<128x128xbf16>
    %cst_21 = arith.constant dense<0.000000e+00> : vector<8x128xf32>
    %35 = tpu.matmul %33, %34, %cst_21 {dimension_numbers = #tpu.dot_dimension_numbers<[1], [0], [0], [1], [0, 0, 1, 1], [], []>} : vector<8x128xbf16>, vector<128x128xbf16>, vector<8x128xf32> -> vector<8x128xf32>
    %c3 = arith.constant 3 : index
    %c0_22 = arith.constant 0 : index
    %36 = vector.load %arg8[%c3, %c0_22] : memref<6x128xf32, #tpu.memory_space<vmem>>, vector<1x128xf32>
    %37 = vector.broadcast %36 : vector<1x128xf32> to vector<8x128xf32>
    %38 = arith.addf %35, %37 : vector<8x128xf32>
    %cst_23 = arith.constant 5.000000e-01 : f32
    %39 = vector.broadcast %cst_23 : f32 to vector<8x128xf32>
    %40 = arith.mulf %39, %38 : vector<8x128xf32>
    %41 = math.tanh %40 : vector<8x128xf32>
    %cst_24 = arith.constant 1.000000e+00 : f32
    %42 = vector.broadcast %cst_24 : f32 to vector<8x128xf32>
    %43 = arith.addf %41, %42 : vector<8x128xf32>
    %cst_25 = arith.constant 5.000000e-01 : f32
    %44 = vector.broadcast %cst_25 : f32 to vector<8x128xf32>
    %45 = arith.mulf %44, %43 : vector<8x128xf32>
    %46 = arith.truncf %45 : vector<8x128xf32> to vector<8x128xbf16>
    %c0_26 = arith.constant 0 : index
    %c0_27 = arith.constant 0 : index
    %47 = vector.load %arg6[%c0_26, %c0_27] : memref<128x128xbf16, #tpu.memory_space<vmem>>, vector<128x128xbf16>
    %cst_28 = arith.constant dense<0.000000e+00> : vector<8x128xf32>
    %48 = tpu.matmul %46, %47, %cst_28 {dimension_numbers = #tpu.dot_dimension_numbers<[1], [0], [0], [1], [0, 0, 1, 1], [], []>} : vector<8x128xbf16>, vector<128x128xbf16>, vector<8x128xf32> -> vector<8x128xf32>
    %c4 = arith.constant 4 : index
    %c0_29 = arith.constant 0 : index
    %49 = vector.load %arg8[%c4, %c0_29] : memref<6x128xf32, #tpu.memory_space<vmem>>, vector<1x128xf32>
    %50 = vector.broadcast %49 : vector<1x128xf32> to vector<8x128xf32>
    %51 = arith.addf %48, %50 : vector<8x128xf32>
    %cst_30 = arith.constant 5.000000e-01 : f32
    %52 = vector.broadcast %cst_30 : f32 to vector<8x128xf32>
    %53 = arith.mulf %52, %51 : vector<8x128xf32>
    %54 = math.tanh %53 : vector<8x128xf32>
    %cst_31 = arith.constant 1.000000e+00 : f32
    %55 = vector.broadcast %cst_31 : f32 to vector<8x128xf32>
    %56 = arith.addf %54, %55 : vector<8x128xf32>
    %cst_32 = arith.constant 5.000000e-01 : f32
    %57 = vector.broadcast %cst_32 : f32 to vector<8x128xf32>
    %58 = arith.mulf %57, %56 : vector<8x128xf32>
    %59 = arith.truncf %58 : vector<8x128xf32> to vector<8x128xbf16>
    %c0_33 = arith.constant 0 : index
    %c0_34 = arith.constant 0 : index
    %60 = vector.load %arg7[%c0_33, %c0_34] : memref<128x128xbf16, #tpu.memory_space<vmem>>, vector<128x128xbf16>
    %cst_35 = arith.constant dense<0.000000e+00> : vector<8x128xf32>
    %61 = tpu.matmul %59, %60, %cst_35 {dimension_numbers = #tpu.dot_dimension_numbers<[1], [0], [0], [1], [0, 0, 1, 1], [], []>} : vector<8x128xbf16>, vector<128x128xbf16>, vector<8x128xf32> -> vector<8x128xf32>
    %c5 = arith.constant 5 : index
    %c0_36 = arith.constant 0 : index
    %62 = vector.load %arg8[%c5, %c0_36] : memref<6x128xf32, #tpu.memory_space<vmem>>, vector<1x128xf32>
    %63 = vector.broadcast %62 : vector<1x128xf32> to vector<8x128xf32>
    %64 = arith.addf %61, %63 : vector<8x128xf32>
    %c0_37 = arith.constant 0 : index
    %c0_38 = arith.constant 0 : index
    %65 = vector.load %arg9[%c0_37, %c0_38] : memref<8x128xf32, #tpu.memory_space<vmem>>, vector<8x128xf32>
    tpu.vector_store %arg9[%c0_37, %c0_38], %64 {strides = array<i32>} : memref<8x128xf32, #tpu.memory_space<vmem>>, vector<8x128xf32>,
    return
  }
  func.func @transform_0(%arg0: i32) -> (i32, i32) {
    %c0_i32 = arith.constant 0 : i32
    %c0_i32_0 = arith.constant 0 : i32
    return %arg0, %c0_i32 : i32, i32
  }
  func.func @transform_1(%arg0: i32) -> (i32, i32) {
    %c0_i32 = arith.constant 0 : i32
    %c0_i32_0 = arith.constant 0 : i32
    %c0_i32_1 = arith.constant 0 : i32
    return %c0_i32, %c0_i32_0 : i32, i32
  }
  func.func @transform_2(%arg0: i32) -> (i32, i32) {
    %c0_i32 = arith.constant 0 : i32
    %c0_i32_0 = arith.constant 0 : i32
    %c0_i32_1 = arith.constant 0 : i32
    return %c0_i32, %c0_i32_0 : i32, i32
  }
  func.func @transform_3(%arg0: i32) -> (i32, i32) {
    %c0_i32 = arith.constant 0 : i32
    %c0_i32_0 = arith.constant 0 : i32
    %c0_i32_1 = arith.constant 0 : i32
    return %c0_i32, %c0_i32_0 : i32, i32
  }
  func.func @transform_4(%arg0: i32) -> (i32, i32) {
    %c0_i32 = arith.constant 0 : i32
    %c0_i32_0 = arith.constant 0 : i32
    %c0_i32_1 = arith.constant 0 : i32
    return %c0_i32, %c0_i32_0 : i32, i32
  }
  func.func @transform_5(%arg0: i32) -> (i32, i32) {
    %c0_i32 = arith.constant 0 : i32
    %c0_i32_0 = arith.constant 0 : i32
    %c0_i32_1 = arith.constant 0 : i32
    return %c0_i32, %c0_i32_0 : i32, i32
  }
  func.func @transform_6(%arg0: i32) -> (i32, i32) {
    %c0_i32 = arith.constant 0 : i32
    %c0_i32_0 = arith.constant 0 : i32
    %c0_i32_1 = arith.constant 0 : i32
    return %c0_i32, %c0_i32_0 : i32, i32
  }
  func.func @transform_7(%arg0: i32) -> (i32, i32) {
    %c0_i32 = arith.constant 0 : i32
    %c0_i32_0 = arith.constant 0 : i32
    %c0_i32_1 = arith.constant 0 : i32
    return %c0_i32, %c0_i32_0 : i32, i32
  }
  func.func @transform_8(%arg0: i32) -> (i32, i32) {
    %c0_i32 = arith.constant 0 : i32
    %c0_i32_0 = arith.constant 0 : i32
    return %arg0, %c0_i32 : i32, i32
  }
}

</mosaic_0001>

<llo_original>
// kernel: tpu_custom_call.1
$region0: #{tpu_custom_call.1}
  #allocation0 [shape = 'u32[]', space=smem, size = 0x4, offset = 0x4, fixed_abs, tag = 'smem constant byte address 0x4 - core index']
  #allocation1 [shape = 'u32[72,128]{1,0:T(1,128)}', space=vmem, size = 0x9000, scoped, tag = 'internal scratch']
  %s0 = inlined_call_operand.hbm [shape: f32[8,128], index: 0, kind: input, shape index: {}]
  %s1 = inlined_call_operand.hbm [shape: bf16[128,128], index: 1, kind: input, shape index: {}]
  %s2 = inlined_call_operand.hbm [shape: bf16[128,128], index: 2, kind: input, shape index: {}]
  %s3 = inlined_call_operand.hbm [shape: bf16[128,128], index: 3, kind: input, shape index: {}]
  %s4 = inlined_call_operand.hbm [shape: bf16[128,128], index: 4, kind: input, shape index: {}]
  %s5 = inlined_call_operand.hbm [shape: bf16[128,128], index: 5, kind: input, shape index: {}]
  %s6 = inlined_call_operand.hbm [shape: bf16[128,128], index: 6, kind: input, shape index: {}]
  %s7 = inlined_call_operand.hbm [shape: f32[6,128], index: 7, kind: input, shape index: {}]
  %s8 = inlined_call_operand.hbm [shape: f32[8,128], index: 8, kind: output, shape index: {}]
  %s9 = sld [smem:[#allocation0]]
  $region74: #{tpu_custom_call.1} parent=0
    _
  %s11 = ssub.s32 1, %s9
  %s12 = scalar_select 0, %s11, %s9
  $region1: #{tpu_custom_call.1} parent=0
    #allocation2 [shape = 'u8[4096]{0}', space=vmem, size = 0x1000, scoped, tag = 'input window, operand 0, single buffered']
    #allocation3 [shape = 's32[1]{0}', space=sflag, size = 0x4, scoped, tag = 'scoped memory for tpu_custom_call.1']
    #allocation4 [shape = 's32[1]{0}', space=sflag, size = 0x4, scoped, tag = 'scoped memory for tpu_custom_call.1']
    #allocation5 [shape = 'u8[32768]{0}', space=vmem, size = 0x8000, scoped, tag = 'input window, operand 1, single buffered']
    #allocation6 [shape = 's32[1]{0}', space=sflag, size = 0x4, scoped, tag = 'scoped memory for tpu_custom_call.1']
    #allocation7 [shape = 'u8[32768]{0}', space=vmem, size = 0x8000, scoped, tag = 'input window, operand 2, single buffered']
    #allocation8 [shape = 'u8[32768]{0}', space=vmem, size = 0x8000, scoped, tag = 'input window, operand 3, single buffered']
    #allocation9 [shape = 's32[1]{0}', space=sflag, size = 0x4, scoped, tag = 'scoped memory for tpu_custom_call.1']
    #allocation10 [shape = 'u8[32768]{0}', space=vmem, size = 0x8000, scoped, tag = 'input window, operand 4, single buffered']
    #allocation11 [shape = 'u8[32768]{0}', space=vmem, size = 0x8000, scoped, tag = 'input window, operand 5, single buffered']
    #allocation12 [shape = 's32[1]{0}', space=sflag, size = 0x4, scoped, tag = 'scoped memory for tpu_custom_call.1']
    #allocation13 [shape = 'u8[32768]{0}', space=vmem, size = 0x8000, scoped, tag = 'input window, operand 6, single buffered']
    #allocation14 [shape = 'u8[4096]{0}', space=vmem, size = 0x1000, scoped, tag = 'input window, operand 7, single buffered']
    #allocation15 [shape = 's32[1]{0}', space=sflag, size = 0x4, scoped, tag = 'scoped memory for tpu_custom_call.1']
    #allocation16 [shape = 'u8[4096]{0}', space=vmem, size = 0x1000, scoped, tag = 'output window, operand 0, single buffered']
    %13 = vsyncpa [#allocation3], 0
    %14 = vsyncpa [#allocation6], 0
    %15 = vsyncpa [#allocation9], 0
    %16 = vsyncpa [#allocation12], 0
    %17 = vsyncpa [#allocation15], 0
    %18 = vsyncpa [#allocation4], 0
    // Predicated region
    $region2: #{tpu_custom_call.1} parent=1 // pred_check
      _
    $region3: #{tpu_custom_call.1} parent=1 // pred_check_branch
      %20 = sbr.rel (0) target = $region5
    $region4: #{tpu_custom_call.1} parent=1 // pred_region
      %22 = vsyncadd [#allocation3], 0
      %s24 = sshll.u32 %s0, 4
      %s25 = int_to_ptr.hbm [resolvable:$true] %s24
      %s26 = sshll.u32 [#allocation2], 4
      %s27 = int_to_ptr.vmem [resolvable:$true] %s26
      %29 = dma.hbm_to_vmem [thread:$0]  %s25, 128, %s27, [#allocation3]
    $region5: #{tpu_custom_call.1} parent=1 // pred_fallthru
      _
    // Predicated region
    $region6: #{tpu_custom_call.1} parent=1 // pred_check
      _
    $region7: #{tpu_custom_call.1} parent=1 // pred_check_branch
      %31 = sbr.rel (0) target = $region9
    $region8: #{tpu_custom_call.1} parent=1 // pred_region
      %33 = vsyncadd [#allocation6], 0
      %s34 = sshll.u32 %s1, 4
      %s35 = int_to_ptr.hbm [resolvable:$true] %s34
      %s36 = sshll.u32 [#allocation5], 4
      %s37 = int_to_ptr.vmem [resolvable:$true] %s36
      %42 = dma.hbm_to_vmem [thread:$0]  %s35, 1024, %s37, [#allocation6], 64, 64, 4
    $region9: #{tpu_custom_call.1} parent=1 // pred_fallthru
      _
    // Predicated region
    $region10: #{tpu_custom_call.1} parent=1 // pred_check
      _
    $region11: #{tpu_custom_call.1} parent=1 // pred_check_branch
      %44 = sbr.rel (0) target = $region13
    $region12: #{tpu_custom_call.1} parent=1 // pred_region
      %46 = vsyncadd [#allocation6], 0
      %s47 = sshll.u32 %s2, 4
      %s48 = int_to_ptr.hbm [resolvable:$true] %s47
      %s49 = sshll.u32 [#allocation7], 4
      %s50 = int_to_ptr.vmem [resolvable:$true] %s49
      %55 = dma.hbm_to_vmem [thread:$0]  %s48, 1024, %s50, [#allocation6], 64, 64, 4
    $region13: #{tpu_custom_call.1} parent=1 // pred_fallthru
      _
    // Predicated region
    $region14: #{tpu_custom_call.1} parent=1 // pred_check
      _
    $region15: #{tpu_custom_call.1} parent=1 // pred_check_branch
      %57 = sbr.rel (0) target = $region17
    $region16: #{tpu_custom_call.1} parent=1 // pred_region
      %59 = vsyncadd [#allocation9], 0
      %s60 = sshll.u32 %s3, 4
      %s61 = int_to_ptr.hbm [resolvable:$true] %s60
      %s62 = sshll.u32 [#allocation8], 4
      %s63 = int_to_ptr.vmem [resolvable:$true] %s62
      %68 = dma.hbm_to_vmem [thread:$0]  %s61, 1024, %s63, [#allocation9], 64, 64, 4
    $region17: #{tpu_custom_call.1} parent=1 // pred_fallthru
      _
    // Predicated region
    $region18: #{tpu_custom_call.1} parent=1 // pred_check
      _
    $region19: #{tpu_custom_call.1} parent=1 // pred_check_branch
      %70 = sbr.rel (0) target = $region21
    $region20: #{tpu_custom_call.1} parent=1 // pred_region
      %72 = vsyncadd [#allocation9], 0
      %s73 = sshll.u32 %s4, 4
      %s74 = int_to_ptr.hbm [resolvable:$true] %s73
      %s75 = sshll.u32 [#allocation10], 4
      %s76 = int_to_ptr.vmem [resolvable:$true] %s75
      %81 = dma.hbm_to_vmem [thread:$0]  %s74, 1024, %s76, [#allocation9], 64, 64, 4
    $region21: #{tpu_custom_call.1} parent=1 // pred_fallthru
      _
    // Predicated region
    $region22: #{tpu_custom_call.1} parent=1 // pred_check
      _
    $region23: #{tpu_custom_call.1} parent=1 // pred_check_branch
      %83 = sbr.rel (0) target = $region25
    $region24: #{tpu_custom_call.1} parent=1 // pred_region
      %85 = vsyncadd [#allocation12], 0
      %s86 = sshll.u32 %s5, 4
      %s87 = int_to_ptr.hbm [resolvable:$true] %s86
      %s88 = sshll.u32 [#allocation11], 4
      %s89 = int_to_ptr.vmem [resolvable:$true] %s88
      %94 = dma.hbm_to_vmem [thread:$0]  %s87, 1024, %s89, [#allocation12], 64, 64, 4
    $region25: #{tpu_custom_call.1} parent=1 // pred_fallthru
      _
    // Predicated region
    $region26: #{tpu_custom_call.1} parent=1 // pred_check
      _
    $region27: #{tpu_custom_call.1} parent=1 // pred_check_branch
      %96 = sbr.rel (0) target = $region29
    $region28: #{tpu_custom_call.1} parent=1 // pred_region
      %98 = vsyncadd [#allocation12], 0
      %s99 = sshll.u32 %s6, 4
      %s100 = int_to_ptr.hbm [resolvable:$true] %s99
      %s101 = sshll.u32 [#allocation13], 4
      %s102 = int_to_ptr.vmem [resolvable:$true] %s101
      %107 = dma.hbm_to_vmem [thread:$0]  %s100, 1024, %s102, [#allocation12], 64, 64, 4
    $region29: #{tpu_custom_call.1} parent=1 // pred_fallthru
      _
    // Predicated region
    $region30: #{tpu_custom_call.1} parent=1 // pred_check
      _
    $region31: #{tpu_custom_call.1} parent=1 // pred_check_branch
      %109 = sbr.rel (0) target = $region33
    $region32: #{tpu_custom_call.1} parent=1 // pred_region
      %111 = vsyncadd [#allocation15], 0
      %s113 = sshll.u32 %s7, 4
      %s114 = int_to_ptr.hbm [resolvable:$true] %s113
      %s115 = sshll.u32 [#allocation14], 4
      %s116 = int_to_ptr.vmem [resolvable:$true] %s115
      %118 = dma.hbm_to_vmem [thread:$0]  %s114, 128, %s116, [#allocation15]
    $region33: #{tpu_custom_call.1} parent=1 // pred_fallthru
      _
    // Predicated region
    $region34: #{tpu_custom_call.1} parent=1 // pred_check
      _
    $region35: #{tpu_custom_call.1} parent=1 // pred_check_branch
      %120 = sbr.rel (0) target = $region37
    $region36: #{tpu_custom_call.1} parent=1 // pred_region
      %122 = dma.done [#allocation3], 128
    $region37: #{tpu_custom_call.1} parent=1 // pred_fallthru
      _
    // Predicated region
    $region38: #{tpu_custom_call.1} parent=1 // pred_check
      _
    $region39: #{tpu_custom_call.1} parent=1 // pred_check_branch
      %124 = sbr.rel (0) target = $region41
    $region40: #{tpu_custom_call.1} parent=1 // pred_region
      %126 = dma.done [#allocation6], 1024
    $region41: #{tpu_custom_call.1} parent=1 // pred_fallthru
      _
    // Predicated region
    $region42: #{tpu_custom_call.1} parent=1 // pred_check
      _
    $region43: #{tpu_custom_call.1} parent=1 // pred_check_branch
      %128 = sbr.rel (0) target = $region45
    $region44: #{tpu_custom_call.1} parent=1 // pred_region
      %130 = dma.done [#allocation6], 1024
    $region45: #{tpu_custom_call.1} parent=1 // pred_fallthru
      _
    // Predicated region
    $region46: #{tpu_custom_call.1} parent=1 // pred_check
      _
    $region47: #{tpu_custom_call.1} parent=1 // pred_check_branch
      %132 = sbr.rel (0) target = $region49
    $region48: #{tpu_custom_call.1} parent=1 // pred_region
      %134 = dma.done [#allocation9], 1024
    $region49: #{tpu_custom_call.1} parent=1 // pred_fallthru
      _
    // Predicated region
    $region50: #{tpu_custom_call.1} parent=1 // pred_check
      _
    $region51: #{tpu_custom_call.1} parent=1 // pred_check_branch
      %136 = sbr.rel (0) target = $region53
    $region52: #{tpu_custom_call.1} parent=1 // pred_region
      %138 = dma.done [#allocation9], 1024
    $region53: #{tpu_custom_call.1} parent=1 // pred_fallthru
      _
    // Predicated region
    $region54: #{tpu_custom_call.1} parent=1 // pred_check
      _
    $region55: #{tpu_custom_call.1} parent=1 // pred_check_branch
      %140 = sbr.rel (0) target = $region57
    $region56: #{tpu_custom_call.1} parent=1 // pred_region
      %142 = dma.done [#allocation12], 1024
    $region57: #{tpu_custom_call.1} parent=1 // pred_fallthru
      _
    // Predicated region
    $region58: #{tpu_custom_call.1} parent=1 // pred_check
      _
    $region59: #{tpu_custom_call.1} parent=1 // pred_check_branch
      %144 = sbr.rel (0) target = $region61
    $region60: #{tpu_custom_call.1} parent=1 // pred_region
      %146 = dma.done [#allocation12], 1024
    $region61: #{tpu_custom_call.1} parent=1 // pred_fallthru
      _
    // Predicated region
    $region62: #{tpu_custom_call.1} parent=1 // pred_check
      _
    $region63: #{tpu_custom_call.1} parent=1 // pred_check_branch
      %148 = sbr.rel (0) target = $region65
    $region64: #{tpu_custom_call.1} parent=1 // pred_region
      %150 = dma.done [#allocation15], 128
    $region65: #{tpu_custom_call.1} parent=1 // pred_fallthru
      _
    %v151 = vld [vmem:[#allocation2] sm:$0xff]
    %v152 = vpack.c.bf16 %v151, %v151
    %v153 = vld [vmem:[#allocation5] sm:$0xf]
    %v154 = vld [vmem:[#allocation5 + $0x4] sm:$0xf]
    %v155 = vld [vmem:[#allocation5 + $0x8] sm:$0xf]
    %v156 = vld [vmem:[#allocation5 + $0xc] sm:$0xf]
    %v157 = vld [vmem:[#allocation5 + $0x10] sm:$0xf]
    %v158 = vld [vmem:[#allocation5 + $0x14] sm:$0xf]
    %v159 = vld [vmem:[#allocation5 + $0x18] sm:$0xf]
    %v160 = vld [vmem:[#allocation5 + $0x1c] sm:$0xf]
    %v161 = vld [vmem:[#allocation5 + $0x20] sm:$0xf]
    %v162 = vld [vmem:[#allocation5 + $0x24] sm:$0xf]
    %v163 = vld [vmem:[#allocation5 + $0x28] sm:$0xf]
    %v164 = vld [vmem:[#allocation5 + $0x2c] sm:$0xf]
    %v165 = vld [vmem:[#allocation5 + $0x30] sm:$0xf]
    %v166 = vld [vmem:[#allocation5 + $0x34] sm:$0xf]
    %v167 = vld [vmem:[#allocation5 + $0x38] sm:$0xf]
    %v168 = vld [vmem:[#allocation5 + $0x3c] sm:$0xf]
    %v169 = vld [vmem:[#allocation14] sm:$0x1]
    %v170 = vperm.slane %v169, 0
    %v187 = vunpack.c.l.b16 %v153
    %v188 = vunpack.c.l.b16 %v154
    %v189 = vunpack.c.l.b16 %v155
    %v190 = vunpack.c.l.b16 %v156
    %v191 = vunpack.c.l.b16 %v157
    %v192 = vunpack.c.l.b16 %v158
    %v193 = vunpack.c.l.b16 %v159
    %v194 = vunpack.c.l.b16 %v160
    %v195 = vunpack.c.l.b16 %v161
    %v196 = vunpack.c.l.b16 %v162
    %v197 = vunpack.c.l.b16 %v163
    %v198 = vunpack.c.l.b16 %v164
    %v199 = vunpack.c.l.b16 %v165
    %v200 = vunpack.c.l.b16 %v166
    %v201 = vunpack.c.l.b16 %v167
    %v202 = vunpack.c.l.b16 %v168
    %v203 = vpack.c.b16 %v188, %v187
    %v204 = vpack.c.b16 %v190, %v189
    %v205 = vpack.c.b16 %v192, %v191
    %v206 = vpack.c.b16 %v194, %v193
    %v207 = vpack.c.b16 %v196, %v195
    %v208 = vpack.c.b16 %v198, %v197
    %v209 = vpack.c.b16 %v200, %v199
    %v210 = vpack.c.b16 %v202, %v201
    %219 = vmatpush.bf16.msra.mxu0 %v210
    %220 = vmatpush.bf16.msra.mxu0 %v209
    %221 = vmatpush.bf16.msra.mxu0 %v208
    %222 = vmatpush.bf16.msra.mxu0 %v207
    %223 = vmatpush.bf16.msra.mxu0 %v206
    %224 = vmatpush.bf16.msra.mxu0 %v205
    %225 = vmatpush.bf16.msra.mxu0 %v204
    %226 = vmatpush.bf16.msra.mxu0 %v203
    %227 = vmatmul.bf16.gmra.mxu0 %v152
    %v228 = vpop.f32.mrf.mxu0
    %v229 = vadd.f32 %v170, %v228
    %v230 = vpop.f32.mrf.mxu0
    %231 = vdwg.mxu0
    %v232 = vmul.f32 %v229, 0.5
    %v233 = vtanh.pop %v232
    %v234 = vadd.f32 %v233, 1.0
    %v235 = vmul.f32 %v234, 0.5
    %v236 = vpack.c.bf16 %v235, %v235
    %v237 = vld [vmem:[#allocation7] sm:$0xf]
    %v238 = vld [vmem:[#allocation7 + $0x4] sm:$0xf]
    %v239 = vld [vmem:[#allocation7 + $0x8] sm:$0xf]
    %v240 = vld [vmem:[#allocation7 + $0xc] sm:$0xf]
    %v241 = vld [vmem:[#allocation7 + $0x10] sm:$0xf]
    %v242 = vld [vmem:[#allocation7 + $0x14] sm:$0xf]
    %v243 = vld [vmem:[#allocation7 + $0x18] sm:$0xf]
    %v244 = vld [vmem:[#allocation7 + $0x1c] sm:$0xf]
    %v245 = vld [vmem:[#allocation7 + $0x20] sm:$0xf]
    %v246 = vld [vmem:[#allocation7 + $0x24] sm:$0xf]
    %v247 = vld [vmem:[#allocation7 + $0x28] sm:$0xf]
    %v248 = vld [vmem:[#allocation7 + $0x2c] sm:$0xf]
    %v249 = vld [vmem:[#allocation7 + $0x30] sm:$0xf]
    %v250 = vld [vmem:[#allocation7 + $0x34] sm:$0xf]
    %v251 = vld [vmem:[#allocation7 + $0x38] sm:$0xf]
    %v252 = vld [vmem:[#allocation7 + $0x3c] sm:$0xf]
    %v253 = vld [vmem:[#allocation14 + $0x1] sm:$0x1]
    %v254 = vperm.slane %v253, 0
    %v271 = vunpack.c.l.b16 %v237
    %v272 = vunpack.c.l.b16 %v238
    %v273 = vunpack.c.l.b16 %v239
    %v274 = vunpack.c.l.b16 %v240
    %v275 = vunpack.c.l.b16 %v241
    %v276 = vunpack.c.l.b16 %v242
    %v277 = vunpack.c.l.b16 %v243
    %v278 = vunpack.c.l.b16 %v244
    %v279 = vunpack.c.l.b16 %v245
    %v280 = vunpack.c.l.b16 %v246
    %v281 = vunpack.c.l.b16 %v247
    %v282 = vunpack.c.l.b16 %v248
    %v283 = vunpack.c.l.b16 %v249
    %v284 = vunpack.c.l.b16 %v250
    %v285 = vunpack.c.l.b16 %v251
    %v286 = vunpack.c.l.b16 %v252
    %v287 = vpack.c.b16 %v272, %v271
    %v288 = vpack.c.b16 %v274, %v273
    %v289 = vpack.c.b16 %v276, %v275
    %v290 = vpack.c.b16 %v278, %v277
    %v291 = vpack.c.b16 %v280, %v279
    %v292 = vpack.c.b16 %v282, %v281
    %v293 = vpack.c.b16 %v284, %v283
    %v294 = vpack.c.b16 %v286, %v285
    %303 = vmatpush.bf16.msra.mxu0 %v294
    %304 = vmatpush.bf16.msra.mxu0 %v293
    %305 = vmatpush.bf16.msra.mxu0 %v292
    %306 = vmatpush.bf16.msra.mxu0 %v291
    %307 = vmatpush.bf16.msra.mxu0 %v290
    %308 = vmatpush.bf16.msra.mxu0 %v289
    %309 = vmatpush.bf16.msra.mxu0 %v288
    %310 = vmatpush.bf16.msra.mxu0 %v287
    %311 = vmatmul.bf16.gmra.mxu0 %v236
    %v312 = vpop.f32.mrf.mxu0
    %v313 = vadd.f32 %v254, %v312
    %v314 = vpop.f32.mrf.mxu0
    %315 = vdwg.mxu0
    %v316 = vmul.f32 %v313, 0.5
    %v317 = vtanh.pop %v316
    %v318 = vadd.f32 %v317, 1.0
    %v319 = vmul.f32 %v318, 0.5
    %v320 = vpack.c.bf16 %v319, %v319
    %v321 = vld [vmem:[#allocation8] sm:$0xf]
    %v322 = vld [vmem:[#allocation8 + $0x4] sm:$0xf]
    %v323 = vld [vmem:[#allocation8 + $0x8] sm:$0xf]
    %v324 = vld [vmem:[#allocation8 + $0xc] sm:$0xf]
    %v325 = vld [vmem:[#allocation8 + $0x10] sm:$0xf]
    %v326 = vld [vmem:[#allocation8 + $0x14] sm:$0xf]
    %v327 = vld [vmem:[#allocation8 + $0x18] sm:$0xf]
    %v328 = vld [vmem:[#allocation8 + $0x1c] sm:$0xf]
    %v329 = vld [vmem:[#allocation8 + $0x20] sm:$0xf]
    %v330 = vld [vmem:[#allocation8 + $0x24] sm:$0xf]
    %v331 = vld [vmem:[#allocation8 + $0x28] sm:$0xf]
    %v332 = vld [vmem:[#allocation8 + $0x2c] sm:$0xf]
    %v333 = vld [vmem:[#allocation8 + $0x30] sm:$0xf]
    %v334 = vld [vmem:[#allocation8 + $0x34] sm:$0xf]
    %v335 = vld [vmem:[#allocation8 + $0x38] sm:$0xf]
    %v336 = vld [vmem:[#allocation8 + $0x3c] sm:$0xf]
    %v337 = vld [vmem:[#allocation14 + $0x2] sm:$0x1]
    %v338 = vperm.slane %v337, 0
    %v355 = vunpack.c.l.b16 %v321
    %v356 = vunpack.c.l.b16 %v322
    %v357 = vunpack.c.l.b16 %v323
    %v358 = vunpack.c.l.b16 %v324
    %v359 = vunpack.c.l.b16 %v325
    %v360 = vunpack.c.l.b16 %v326
    %v361 = vunpack.c.l.b16 %v327
    %v362 = vunpack.c.l.b16 %v328
    %v363 = vunpack.c.l.b16 %v329
    %v364 = vunpack.c.l.b16 %v330
    %v365 = vunpack.c.l.b16 %v331
    %v366 = vunpack.c.l.b16 %v332
    %v367 = vunpack.c.l.b16 %v333
    %v368 = vunpack.c.l.b16 %v334
    %v369 = vunpack.c.l.b16 %v335
    %v370 = vunpack.c.l.b16 %v336
    %v371 = vpack.c.b16 %v356, %v355
    %v372 = vpack.c.b16 %v358, %v357
    %v373 = vpack.c.b16 %v360, %v359
    %v374 = vpack.c.b16 %v362, %v361
    %v375 = vpack.c.b16 %v364, %v363
    %v376 = vpack.c.b16 %v366, %v365
    %v377 = vpack.c.b16 %v368, %v367
    %v378 = vpack.c.b16 %v370, %v369
    %387 = vmatpush.bf16.msra.mxu0 %v378
    %388 = vmatpush.bf16.msra.mxu0 %v377
    %389 = vmatpush.bf16.msra.mxu0 %v376
    %390 = vmatpush.bf16.msra.mxu0 %v375
    %391 = vmatpush.bf16.msra.mxu0 %v374
    %392 = vmatpush.bf16.msra.mxu0 %v373
    %393 = vmatpush.bf16.msra.mxu0 %v372
    %394 = vmatpush.bf16.msra.mxu0 %v371
    %395 = vmatmul.bf16.gmra.mxu0 %v320
    %v396 = vpop.f32.mrf.mxu0
    %v397 = vadd.f32 %v338, %v396
    %v398 = vpop.f32.mrf.mxu0
    %399 = vdwg.mxu0
    %v400 = vpack.c.bf16 %v397, %v397
    %v401 = vld [vmem:[#allocation10] sm:$0xf]
    %v402 = vld [vmem:[#allocation10 + $0x4] sm:$0xf]
    %v403 = vld [vmem:[#allocation10 + $0x8] sm:$0xf]
    %v404 = vld [vmem:[#allocation10 + $0xc] sm:$0xf]
    %v405 = vld [vmem:[#allocation10 + $0x10] sm:$0xf]
    %v406 = vld [vmem:[#allocation10 + $0x14] sm:$0xf]
    %v407 = vld [vmem:[#allocation10 + $0x18] sm:$0xf]
    %v408 = vld [vmem:[#allocation10 + $0x1c] sm:$0xf]
    %v409 = vld [vmem:[#allocation10 + $0x20] sm:$0xf]
    %v410 = vld [vmem:[#allocation10 + $0x24] sm:$0xf]
    %v411 = vld [vmem:[#allocation10 + $0x28] sm:$0xf]
    %v412 = vld [vmem:[#allocation10 + $0x2c] sm:$0xf]
    %v413 = vld [vmem:[#allocation10 + $0x30] sm:$0xf]
    %v414 = vld [vmem:[#allocation10 + $0x34] sm:$0xf]
    %v415 = vld [vmem:[#allocation10 + $0x38] sm:$0xf]
    %v416 = vld [vmem:[#allocation10 + $0x3c] sm:$0xf]
    %v417 = vld [vmem:[#allocation14 + $0x3] sm:$0x1]
    %v418 = vperm.slane %v417, 0
    %v435 = vunpack.c.l.b16 %v401
    %v436 = vunpack.c.l.b16 %v402
    %v437 = vunpack.c.l.b16 %v403
    %v438 = vunpack.c.l.b16 %v404
    %v439 = vunpack.c.l.b16 %v405
    %v440 = vunpack.c.l.b16 %v406
    %v441 = vunpack.c.l.b16 %v407
    %v442 = vunpack.c.l.b16 %v408
    %v443 = vunpack.c.l.b16 %v409
    %v444 = vunpack.c.l.b16 %v410
    %v445 = vunpack.c.l.b16 %v411
    %v446 = vunpack.c.l.b16 %v412
    %v447 = vunpack.c.l.b16 %v413
    %v448 = vunpack.c.l.b16 %v414
    %v449 = vunpack.c.l.b16 %v415
    %v450 = vunpack.c.l.b16 %v416
    %v451 = vpack.c.b16 %v436, %v435
    %v452 = vpack.c.b16 %v438, %v437
    %v453 = vpack.c.b16 %v440, %v439
    %v454 = vpack.c.b16 %v442, %v441
    %v455 = vpack.c.b16 %v444, %v443
    %v456 = vpack.c.b16 %v446, %v445
    %v457 = vpack.c.b16 %v448, %v447
    %v458 = vpack.c.b16 %v450, %v449
    %467 = vmatpush.bf16.msra.mxu0 %v458
    %468 = vmatpush.bf16.msra.mxu0 %v457
    %469 = vmatpush.bf16.msra.mxu0 %v456
    %470 = vmatpush.bf16.msra.mxu0 %v455
    %471 = vmatpush.bf16.msra.mxu0 %v454
    %472 = vmatpush.bf16.msra.mxu0 %v453
    %473 = vmatpush.bf16.msra.mxu0 %v452
    %474 = vmatpush.bf16.msra.mxu0 %v451
    %475 = vmatmul.bf16.gmra.mxu0 %v400
    %v476 = vpop.f32.mrf.mxu0
    %v477 = vadd.f32 %v418, %v476
    %v478 = vpop.f32.mrf.mxu0
    %479 = vdwg.mxu0
    %v480 = vmul.f32 %v477, 0.5
    %v481 = vtanh.pop %v480
    %v482 = vadd.f32 %v481, 1.0
    %v483 = vmul.f32 %v482, 0.5
    %v484 = vpack.c.bf16 %v483, %v483
    %v485 = vld [vmem:[#allocation11] sm:$0xf]
    %v486 = vld [vmem:[#allocation11 + $0x4] sm:$0xf]
    %v487 = vld [vmem:[#allocation11 + $0x8] sm:$0xf]
    %v488 = vld [vmem:[#allocation11 + $0xc] sm:$0xf]
    %v489 = vld [vmem:[#allocation11 + $0x10] sm:$0xf]
    %v490 = vld [vmem:[#allocation11 + $0x14] sm:$0xf]
    %v491 = vld [vmem:[#allocation11 + $0x18] sm:$0xf]
    %v492 = vld [vmem:[#allocation11 + $0x1c] sm:$0xf]
    %v493 = vld [vmem:[#allocation11 + $0x20] sm:$0xf]
    %v494 = vld [vmem:[#allocation11 + $0x24] sm:$0xf]
    %v495 = vld [vmem:[#allocation11 + $0x28] sm:$0xf]
    %v496 = vld [vmem:[#allocation11 + $0x2c] sm:$0xf]
    %v497 = vld [vmem:[#allocation11 + $0x30] sm:$0xf]
    %v498 = vld [vmem:[#allocation11 + $0x34] sm:$0xf]
    %v499 = vld [vmem:[#allocation11 + $0x38] sm:$0xf]
    %v500 = vld [vmem:[#allocation11 + $0x3c] sm:$0xf]
    %v501 = vld [vmem:[#allocation14 + $0x4] sm:$0x1]
    %v502 = vperm.slane %v501, 0
    %v519 = vunpack.c.l.b16 %v485
    %v520 = vunpack.c.l.b16 %v486
    %v521 = vunpack.c.l.b16 %v487
    %v522 = vunpack.c.l.b16 %v488
    %v523 = vunpack.c.l.b16 %v489
    %v524 = vunpack.c.l.b16 %v490
    %v525 = vunpack.c.l.b16 %v491
    %v526 = vunpack.c.l.b16 %v492
    %v527 = vunpack.c.l.b16 %v493
    %v528 = vunpack.c.l.b16 %v494
    %v529 = vunpack.c.l.b16 %v495
    %v530 = vunpack.c.l.b16 %v496
    %v531 = vunpack.c.l.b16 %v497
    %v532 = vunpack.c.l.b16 %v498
    %v533 = vunpack.c.l.b16 %v499
    %v534 = vunpack.c.l.b16 %v500
    %v535 = vpack.c.b16 %v520, %v519
    %v536 = vpack.c.b16 %v522, %v521
    %v537 = vpack.c.b16 %v524, %v523
    %v538 = vpack.c.b16 %v526, %v525
    %v539 = vpack.c.b16 %v528, %v527
    %v540 = vpack.c.b16 %v530, %v529
    %v541 = vpack.c.b16 %v532, %v531
    %v542 = vpack.c.b16 %v534, %v533
    %551 = vmatpush.bf16.msra.mxu0 %v542
    %552 = vmatpush.bf16.msra.mxu0 %v541
    %553 = vmatpush.bf16.msra.mxu0 %v540
    %554 = vmatpush.bf16.msra.mxu0 %v539
    %555 = vmatpush.bf16.msra.mxu0 %v538
    %556 = vmatpush.bf16.msra.mxu0 %v537
    %557 = vmatpush.bf16.msra.mxu0 %v536
    %558 = vmatpush.bf16.msra.mxu0 %v535
    %559 = vmatmul.bf16.gmra.mxu0 %v484
    %v560 = vpop.f32.mrf.mxu0
    %v561 = vadd.f32 %v502, %v560
    %v562 = vpop.f32.mrf.mxu0
    %563 = vdwg.mxu0
    %v564 = vmul.f32 %v561, 0.5
    %v565 = vtanh.pop %v564
    %v566 = vadd.f32 %v565, 1.0
    %v567 = vmul.f32 %v566, 0.5
    %v568 = vpack.c.bf16 %v567, %v567
    %v569 = vld [vmem:[#allocation13] sm:$0xf]
    %v570 = vld [vmem:[#allocation13 + $0x4] sm:$0xf]
    %v571 = vld [vmem:[#allocation13 + $0x8] sm:$0xf]
    %v572 = vld [vmem:[#allocation13 + $0xc] sm:$0xf]
    %v573 = vld [vmem:[#allocation13 + $0x10] sm:$0xf]
    %v574 = vld [vmem:[#allocation13 + $0x14] sm:$0xf]
    %v575 = vld [vmem:[#allocation13 + $0x18] sm:$0xf]
    %v576 = vld [vmem:[#allocation13 + $0x1c] sm:$0xf]
    %v577 = vld [vmem:[#allocation13 + $0x20] sm:$0xf]
    %v578 = vld [vmem:[#allocation13 + $0x24] sm:$0xf]
    %v579 = vld [vmem:[#allocation13 + $0x28] sm:$0xf]
    %v580 = vld [vmem:[#allocation13 + $0x2c] sm:$0xf]
    %v581 = vld [vmem:[#allocation13 + $0x30] sm:$0xf]
    %v582 = vld [vmem:[#allocation13 + $0x34] sm:$0xf]
    %v583 = vld [vmem:[#allocation13 + $0x38] sm:$0xf]
    %v584 = vld [vmem:[#allocation13 + $0x3c] sm:$0xf]
    %v585 = vld [vmem:[#allocation14 + $0x5] sm:$0x1]
    %v586 = vperm.slane %v585, 0
    %v603 = vunpack.c.l.b16 %v569
    %v604 = vunpack.c.l.b16 %v570
    %v605 = vunpack.c.l.b16 %v571
    %v606 = vunpack.c.l.b16 %v572
    %v607 = vunpack.c.l.b16 %v573
    %v608 = vunpack.c.l.b16 %v574
    %v609 = vunpack.c.l.b16 %v575
    %v610 = vunpack.c.l.b16 %v576
    %v611 = vunpack.c.l.b16 %v577
    %v612 = vunpack.c.l.b16 %v578
    %v613 = vunpack.c.l.b16 %v579
    %v614 = vunpack.c.l.b16 %v580
    %v615 = vunpack.c.l.b16 %v581
    %v616 = vunpack.c.l.b16 %v582
    %v617 = vunpack.c.l.b16 %v583
    %v618 = vunpack.c.l.b16 %v584
    %v619 = vpack.c.b16 %v604, %v603
    %v620 = vpack.c.b16 %v606, %v605
    %v621 = vpack.c.b16 %v608, %v607
    %v622 = vpack.c.b16 %v610, %v609
    %v623 = vpack.c.b16 %v612, %v611
    %v624 = vpack.c.b16 %v614, %v613
    %v625 = vpack.c.b16 %v616, %v615
    %v626 = vpack.c.b16 %v618, %v617
    %635 = vmatpush.bf16.msra.mxu0 %v626
    %636 = vmatpush.bf16.msra.mxu0 %v625
    %637 = vmatpush.bf16.msra.mxu0 %v624
    %638 = vmatpush.bf16.msra.mxu0 %v623
    %639 = vmatpush.bf16.msra.mxu0 %v622
    %640 = vmatpush.bf16.msra.mxu0 %v621
    %641 = vmatpush.bf16.msra.mxu0 %v620
    %642 = vmatpush.bf16.msra.mxu0 %v619
    %643 = vmatmul.bf16.gmra.mxu0 %v568
    %v644 = vpop.f32.mrf.mxu0
    %v645 = vadd.f32 %v586, %v644
    %v646 = vpop.f32.mrf.mxu0
    %647 = vdwg.mxu0
    %648 = vst [vmem:[#allocation16] sm:$0xff] %v645
    // Predicated region
    $region66: #{tpu_custom_call.1} parent=1 // pred_check
      _
    $region67: #{tpu_custom_call.1} parent=1 // pred_check_branch
      %650 = sbr.rel (0) target = $region69
    $region68: #{tpu_custom_call.1} parent=1 // pred_region
      %652 = vsyncadd [#allocation4], 0
      %s654 = sshll.u32 [#allocation16], 4
      %s655 = int_to_ptr.vmem [resolvable:$true] %s654
      %s656 = sshll.u32 %s8, 4
      %s657 = int_to_ptr.hbm [resolvable:$true] %s656
      %659 = dma.vmem_to_hbm [thread:$0]  %s655, 128, %s657, [#allocation4]
    $region69: #{tpu_custom_call.1} parent=1 // pred_fallthru
      _
    // Predicated region
    $region70: #{tpu_custom_call.1} parent=1 // pred_check
      _
    $region71: #{tpu_custom_call.1} parent=1 // pred_check_branch
      %661 = sbr.rel (0) target = $region73
    $region72: #{tpu_custom_call.1} parent=1 // pred_region
      %663 = dma.done [#allocation4], 128
    $region73: #{tpu_custom_call.1} parent=1 // pred_fallthru
      _
    %664 = vsyncpa [#allocation3], 1
    %665 = vsyncpa [#allocation6], 1
    %666 = vsyncpa [#allocation9], 1
    %667 = vsyncpa [#allocation12], 1
    %668 = vsyncpa [#allocation15], 1
    %669 = vsyncpa [#allocation4], 1

</llo_original>
